<compile_context>
chip_gen: v7x
topology: tpu7x:2x2x1
jax: 0.10.0
libtpu: 0.0.40
codegen_flags: <defaults>
</compile_context>

<pallas_src>
import functools

import jax
import jax.numpy as jnp
from jax import lax
from jax.experimental import pallas as pl
from jax.experimental.pallas import tpu as pltpu


def _round_up(a, b):
    return (a + b - 1) // b * b


def _vmem_capacity_bytes():
    """Per-TensorCore VMEM capacity (128 MiB v5e/v6e, 64 MiB v7x)."""
    try:
        return int(pltpu.get_tpu_info().vmem_capacity_bytes)
    except Exception:  # emulator / unknown chip: be conservative (v7x-sized)
        return 64 << 20


def _residual_linear_kernel(x_ref, w_ref, b_ref, o_ref, xb_ref, *, tn):
    """One (row-tile, out-col-tile) of o = x @ W.T + b + x.

    x_ref:  (tm, Hp)  input rows, native dtype, full contraction dim
    w_ref:  (Hp, tn)  bf16 weight tile, already transposed to (in, out)
    b_ref:  (1, tn)   f32 bias tile
    o_ref:  (tm, tn)  output tile
    xb_ref: (tm, Hp)  bf16 scratch for the cast x tile (filled at j == 0)
    """
    j = pl.program_id(1)

    # The x block index (i, 0) is invariant across j, so cast it to bf16 once
    # per row tile instead of once per output-column tile. The j axis is
    # "arbitrary" (sequential per core), so the scratch carry is well defined.
    @pl.when(j == 0)
    def _():
        xb_ref[...] = x_ref[...].astype(jnp.bfloat16)

    # MXU: bf16 x bf16 -> f32 accumulation, canonical (M,K) x (K,N) layout
    # (weight was transposed once in the wrapper -> no per-step transpose).
    acc = lax.dot_general(
        xb_ref[...],
        w_ref[...],
        dimension_numbers=(((1,), (0,)), ((), ())),
        preferred_element_type=jnp.float32,
    )

    # Residual add in f32, using the output-column slice of the native x tile.
    col0 = pl.multiple_of(j * tn, tn)
    x_res = x_ref[:, pl.ds(col0, tn)]
    o_ref[...] = (acc + b_ref[...] + x_res.astype(jnp.float32)).astype(o_ref.dtype)


def prepare_residual_linear_params(w, b):
    """One-time weight prep: transpose to (in, out), cast bf16, 128-pad.

    Cache the result across forward calls for static inference weights to
    avoid an O(H^2) cast/pad/transpose HBM round-trip on every invocation.
    """
    H = w.shape[0]
    Hp = _round_up(H, 128)
    wt = jnp.swapaxes(w, 0, 1).astype(jnp.bfloat16)        # (in, out) = (K, N)
    if Hp != H:
        wt = jnp.pad(wt, ((0, Hp - H), (0, Hp - H)))
    b2 = b.astype(jnp.float32).reshape(1, H)
    if Hp != H:
        b2 = jnp.pad(b2, ((0, 0), (0, Hp - H)))
    return wt, b2


def residual_linear(x, w, b, *, tm=None, weight_vmem_budget=None, prepared=None):
    """Residual(Linear)(x) == x @ w.T + b + x.

    x: [B, S, H]   w: [H, H] PyTorch Linear weight (out, in)   b: [H]
    prepared: optional cached output of prepare_residual_linear_params(w, b).
    """
    B, S, H = x.shape
    M = B * S
    Hp = _round_up(H, 128)
    x_bytes = jnp.dtype(x.dtype).itemsize

    # ---- device-aware VMEM policy (all quantities are per TensorCore) ----
    vmem_cap = _vmem_capacity_bytes()
    vmem_cap_limit = min(vmem_cap - (8 << 20), 100 << 20)   # ~56 MiB v7x, 100 MiB v5e/v6e
    if weight_vmem_budget is None:
        weight_vmem_budget = vmem_cap // 2                  # 64 MiB v5e/v6e, 32 MiB v7x
    if tm is None:
        tm = 512 if vmem_cap >= (100 << 20) else 256

    # ---- output-column tile: keep the whole weight VMEM-resident if it fits
    # (single-buffered, fetched once); otherwise pick the largest 128-multiple
    # tile within budget, preferring multiples of 256 and accounting for
    # double-buffering of the streamed tiles. ----
    if Hp * Hp * 2 <= weight_vmem_budget:
        tn = Hp
        wb_buffers = 1
    else:
        q = Hp // 128
        max_d = max(1, weight_vmem_budget // (2 * 128 * Hp * 2))
        cands = [d for d in range(1, min(q - 1, max_d) + 1) if q % d == 0]
        even = [d for d in cands if d % 2 == 0]             # tn multiple of 256 for v6e/v7x MXU
        d = max(even) if even else max(cands)
        tn = 128 * d
        wb_buffers = 2
    grid_n = Hp // tn

    # ---- row tile: shrink for tiny M, keep grid_m >= 2 for megacore balance,
    # then shrink until the scratch/accumulator-inclusive VMEM estimate fits. ----
    tm_eff = min(tm, _round_up(M, 8))
    if M > 8 and _round_up(M, tm_eff) // tm_eff < 2:
        tm_eff = _round_up((M + 1) // 2, 8)

    def vmem_est(tm_):
        return (
            2 * tm_ * Hp * x_bytes            # x tile, double-buffered
            + tm_ * Hp * 2                    # bf16 x scratch
            + wb_buffers * Hp * tn * 2        # bf16 weight tile(s)
            + wb_buffers * 8 * tn * 4         # bias tile (sublane-padded)
            + 2 * tm_ * tn * x_bytes          # output tile, double-buffered
            + tm_ * tn * 4                    # f32 matmul accumulator temp
            + (2 << 20)                       # headroom / internal scratch
        )

    while vmem_est(tm_eff) > vmem_cap_limit and tm_eff > 8:
        tm_eff = max(8, _round_up(tm_eff // 2, 8))

    Mp = _round_up(M, tm_eff)
    grid_m = Mp // tm_eff
    vmem_limit = int(min(max(vmem_est(tm_eff), 32 << 20), vmem_cap_limit))

    # ---- glue: pad x, prep weight/bias (cacheable across calls) ----
    x2 = x.reshape(M, H)
    if (Mp, Hp) != (M, H):
        x2 = jnp.pad(x2, ((0, Mp - M), (0, Hp - H)))
    w_p, b_p = prepared if prepared is not None else prepare_residual_linear_params(w, b)

    def spec(shape, imap, buffers=2):
        if buffers == 2:
            return pl.BlockSpec(shape, imap)
        return pl.BlockSpec(shape, imap, pipeline_mode=pl.Buffered(buffers))

    weight_reads = 1 if grid_n == 1 else grid_m
    cost = pl.CostEstimate(
        flops=2 * Mp * Hp * Hp,
        transcendentals=0,
        bytes_accessed=int(2 * Mp * Hp * x_bytes + weight_reads * Hp * Hp * 2 + Hp * 4),
    )

    # TODO(synk): when grid_n > 1 and M is small, swap the grid order (j outer)
    # to re-stream x instead of W when that is less HBM traffic; add K tiling
    # with an f32 accumulator scratch for H so large that a full-K (tm, Hp)
    # tile no longer fits VMEM.
    out = pl.pallas_call(
        functools.partial(_residual_linear_kernel, tn=tn),
        out_shape=jax.ShapeDtypeStruct((Mp, Hp), x.dtype),
        grid_spec=pltpu.PrefetchScalarGridSpec(
            num_scalar_prefetch=0,
            grid=(grid_m, grid_n),
            in_specs=[
                spec((tm_eff, Hp), lambda i, j: (i, 0)),                    # x rows, full K
                spec((Hp, tn), lambda i, j: (0, j), buffers=wb_buffers),    # weight tile (K, N)
                spec((1, tn), lambda i, j: (0, j), buffers=wb_buffers),     # bias tile
            ],
            out_specs=pl.BlockSpec((tm_eff, tn), lambda i, j: (i, j)),
            scratch_shapes=[pltpu.VMEM((tm_eff, Hp), jnp.bfloat16)],
        ),
        compiler_params=pltpu.CompilerParams(
            # j must stay sequential per core (the bf16-x scratch is reused across j).
            dimension_semantics=("parallel", "arbitrary"),
            vmem_limit_bytes=vmem_limit,
        ),
        cost_estimate=cost,
    )(x2, w_p, b_p)

    return out[:M, :H].reshape(B, S, H)


if __name__ == "__main__":
    B, S, H = 2, 8, 32

    key = jax.random.PRNGKey(0)
    kx, kw, kb = jax.random.split(key, 3)

    x = jax.random.normal(kx, (B, S, H), dtype=jnp.float32)
    # deterministic synthetic parameters for the wrapped fnc (nn.Linear(H, H))
    w = jax.random.normal(kw, (H, H), dtype=jnp.float32) * 0.05
    b = jax.random.normal(kb, (H,), dtype=jnp.float32) * 0.05

    params = prepare_residual_linear_params(w, b)   # one-time, cacheable
    out = jax.block_until_ready(residual_linear(x, w, b, prepared=params))

    # Reference: Residual.forward semantics (fnc(x) + x), with the same bf16
    # rounding of the matmul operands the kernel uses (f32 accumulation); the
    # residual x is added at full precision in both.
    xr = x.astype(jnp.bfloat16).astype(jnp.float32)
    wr = w.astype(jnp.bfloat16).astype(jnp.float32)
    ref = jnp.einsum("bsh,oh->bso", xr, wr, precision="highest") + b + x

    assert out.shape == (B, S, H)
    assert jnp.allclose(out, ref, atol=2e-3, rtol=2e-3), "mismatch vs reference"

    print("KERNEL_OK")
</pallas_src>

<mosaic_0001>
module attributes {stable_mosaic.version = 11 : i64} {
  func.func @_residual_linear_kernel(%arg0: i32, %arg1: i32, %arg2: memref<8x128xf32, #tpu.memory_space<vmem>>, %arg3: memref<128x128xbf16, #tpu.memory_space<vmem>>, %arg4: memref<1x128xf32, #tpu.memory_space<vmem>>, %arg5: memref<8x128xf32, #tpu.memory_space<vmem>>, %arg6: memref<8x128xbf16, #tpu.memory_space<vmem>>) attributes {dimension_semantics = [#tpu.dimension_semantics<parallel>, #tpu.dimension_semantics<arbitrary>], iteration_bounds = array<i64: 2, 1>, scalar_prefetch = 0 : i64, scratch_operands = 1 : i64, tpu.core_type = #tpu.core_type<tc>, window_params = [{transform_indices = @transform_0, window_bounds = array<i64: 8, 128>}, {pipeline_mode = #tpu.pipeline_mode<synchronous>, transform_indices = @transform_1, window_bounds = array<i64: 128, 128>}, {pipeline_mode = #tpu.pipeline_mode<synchronous>, transform_indices = @transform_2, window_bounds = array<i64: 1, 128>}, {transform_indices = @transform_3, window_bounds = array<i64: 8, 128>}]} {
    %c0_i32 = arith.constant 0 : i32
    %0 = arith.cmpi eq, %arg1, %c0_i32 : i32
    %1 = arith.extui %0 : i1 to i32
    %c0_i32_0 = arith.constant 0 : i32
    %2 = arith.cmpi ne, %1, %c0_i32_0 : i32
    scf.if %2 {
      %c0_9 = arith.constant 0 : index
      %c0_10 = arith.constant 0 : index
      %15 = vector.load %arg2[%c0_9, %c0_10] : memref<8x128xf32, #tpu.memory_space<vmem>>, vector<8x128xf32>
      %16 = arith.truncf %15 : vector<8x128xf32> to vector<8x128xbf16>
      %c0_11 = arith.constant 0 : index
      %c0_12 = arith.constant 0 : index
      %17 = vector.load %arg6[%c0_11, %c0_12] : memref<8x128xbf16, #tpu.memory_space<vmem>>, vector<8x128xbf16>
      tpu.vector_store %arg6[%c0_11, %c0_12], %16 {strides = array<i32>} : memref<8x128xbf16, #tpu.memory_space<vmem>>, vector<8x128xbf16>,
    } else {
    }
    %c0 = arith.constant 0 : index
    %c0_1 = arith.constant 0 : index
    %3 = vector.load %arg6[%c0, %c0_1] : memref<8x128xbf16, #tpu.memory_space<vmem>>, vector<8x128xbf16>
    %c0_2 = arith.constant 0 : index
    %c0_3 = arith.constant 0 : index
    %4 = vector.load %arg3[%c0_2, %c0_3] : memref<128x128xbf16, #tpu.memory_space<vmem>>, vector<128x128xbf16>
    %cst = arith.constant dense<0.000000e+00> : vector<8x128xf32>
    %5 = tpu.matmul %3, %4, %cst {dimension_numbers = #tpu.dot_dimension_numbers<[1], [0], [0], [1], [0, 0, 1, 1], [], []>} : vector<8x128xbf16>, vector<128x128xbf16>, vector<8x128xf32> -> vector<8x128xf32>
    %c128_i32 = arith.constant 128 : i32
    %6 = arith.muli %arg1, %c128_i32 : i32
    %7 = tpu.assume_multiple %6, 128 : i32
    %c0_4 = arith.constant 0 : index
    %8 = arith.index_cast %7 : i32 to index
    %9 = vector.load %arg2[%c0_4, %8] : memref<8x128xf32, #tpu.memory_space<vmem>>, vector<8x128xf32>
    %c0_5 = arith.constant 0 : index
    %c0_6 = arith.constant 0 : index
    %10 = vector.load %arg4[%c0_5, %c0_6] : memref<1x128xf32, #tpu.memory_space<vmem>>, vector<1x128xf32>
    %11 = vector.broadcast %10 : vector<1x128xf32> to vector<8x128xf32>
    %12 = arith.addf %5, %11 : vector<8x128xf32>
    %13 = arith.addf %12, %9 : vector<8x128xf32>
    %c0_7 = arith.constant 0 : index
    %c0_8 = arith.constant 0 : index
    %14 = vector.load %arg5[%c0_7, %c0_8] : memref<8x128xf32, #tpu.memory_space<vmem>>, vector<8x128xf32>
    tpu.vector_store %arg5[%c0_7, %c0_8], %13 {strides = array<i32>} : memref<8x128xf32, #tpu.memory_space<vmem>>, vector<8x128xf32>,
    return
  }
  func.func @transform_0(%arg0: i32, %arg1: i32) -> (i32, i32) {
    %c0_i32 = arith.constant 0 : i32
    %c0_i32_0 = arith.constant 0 : i32
    return %arg0, %c0_i32 : i32, i32
  }
  func.func @transform_1(%arg0: i32, %arg1: i32) -> (i32, i32) {
    %c0_i32 = arith.constant 0 : i32
    %c0_i32_0 = arith.constant 0 : i32
    return %c0_i32, %arg1 : i32, i32
  }
  func.func @transform_2(%arg0: i32, %arg1: i32) -> (i32, i32) {
    %c0_i32 = arith.constant 0 : i32
    %c0_i32_0 = arith.constant 0 : i32
    return %c0_i32, %arg1 : i32, i32
  }
  func.func @transform_3(%arg0: i32, %arg1: i32) -> (i32, i32) {
    %c0_i32 = arith.constant 0 : i32
    return %arg0, %arg1 : i32, i32
  }
}

</mosaic_0001>

<llo_original>
// kernel: tpu_custom_call.1
$region0: #{tpu_custom_call.1}
  #allocation0 [shape = 'u32[]', space=smem, size = 0x4, offset = 0x4, fixed_abs, tag = 'smem constant byte address 0x4 - core index']
  #allocation1 [shape = 'u32[144,128]{1,0:T(1,128)}', space=vmem, size = 0x12000, scoped, tag = 'internal scratch']
  #allocation2 [shape = 'bf16[8,128]{1,0:T(8,128)(2,1)}', space=vmem, size = 0x800, scoped, tag = 'scratch operand']
  %s0 = inlined_call_operand.hbm [shape: f32[16,128], index: 0, kind: input, shape index: {}]
  %s1 = inlined_call_operand.hbm [shape: bf16[128,128], index: 1, kind: input, shape index: {}]
  %s2 = inlined_call_operand.vmem [shape: f32[1,128], index: 2, kind: input, shape index: {}]
  %s3 = inlined_call_operand.hbm [shape: f32[16,128], index: 3, kind: output, shape index: {}]
  %s4 = sld [smem:[#allocation0]]
  $region57: #{tpu_custom_call.1} parent=0
    _
  %s6 = ssub.s32 1, %s4
  %s7 = scalar_select 0, %s6, %s4
  $region1: #{tpu_custom_call.1} parent=0
    #allocation3 [shape = 'u8[8192]{0}', space=vmem, size = 0x2000, scoped, tag = 'input window, operand 0']
    #allocation4 [shape = 's32[2]{0}', space=sflag, size = 0x8, scoped, tag = 'scoped memory for tpu_custom_call.1']
    #allocation5 [shape = 's32[2]{0}', space=sflag, size = 0x8, scoped, tag = 'scoped memory for tpu_custom_call.1']
    #allocation6 [shape = 'u8[32768]{0}', space=vmem, size = 0x8000, scoped, tag = 'input window, operand 1, single buffered']
    #allocation7 [shape = 's32[1]{0}', space=sflag, size = 0x4, scoped, tag = 'scoped memory for tpu_custom_call.1']
    #allocation8 [shape = 'u8[8192]{0}', space=vmem, size = 0x2000, scoped, tag = 'output window, operand 0']
    %8 = vsyncpa [#allocation4], 0
    %s9 = scalar_lea.sflag [#allocation4], 1
    %10 = vsyncpa %s9, 0
    %11 = vsyncpa [#allocation7], 0
    %12 = vsyncpa [#allocation5], 0
    %s13 = scalar_lea.sflag [#allocation5], 1
    %14 = vsyncpa %s13, 0
    loop: start=0, step=1, limit=4
    $region2: #{tpu_custom_call.1} parent=1 // loop_pre_header
      _
    $region3: #{tpu_custom_call.1} parent=1 // loop_header
      %s16 = sphi 0, %s20
      %p17 = scmp.ge.s32.totalorder %s16, 4
      %s23 = sphi 0, %s35
      %s24 = sphi 0, %s31
      %s25 = sphi 0, %s23
      %s26 = sphi 0, %s24
      %s27 = sphi 0, %s25
      %s28 = sphi 0, %s26
      %s38 = sphi 0, %s40
      %s41 = sphi 0, %s38
      %s42 = sphi 0, %s41
      %s58 = sphi 0, %s42
      %s64 = sphi 0, %s66
      %s67 = sphi 0, %s64
      %s68 = sphi 0, %s67
      %s84 = sphi 0, %s68
      %s90 = sphi 0, %s92
      %s93 = sphi 0, %s90
      %s94 = sphi 0, %s93
      %s110 = sphi 0, %s94
      %s118 = sphi 0, %s120
      %s121 = sphi 0, %s118
      %s122 = sphi 0, %s121
      %s138 = sphi 0, %s122
    $region4: #{tpu_custom_call.1} parent=1 // loop_header_branch
      %19 = sbr.rel (%p17) target = $region8
    $region5: #{tpu_custom_call.1} parent=1 // loop_body
      %s21 = ssub.s32 %s16, 1
      %s22 = ssub.s32 %s16, 2
      %s29 = sadd.s32 1, %s24
      %p30 = scmp.ge.s32.totalorder %s29, 1
      %s31 = scalar_select %p30, 0, %s29
      %s32 = sadd.s32 1, %s23
      %s33 = scalar_select %p30, %s32, %s23
      %p34 = scmp.ge.s32.totalorder %s33, 2
      %s35 = scalar_select %p34, 0, %s33
      %s36 = ssub.s32 %s23, %s35
      %p37 = scmp.eq.s32.totalorder %s36, 0
      %s39 = sadd.s32 %s38, 1
      %s40 = scalar_select %p37, %s38, %s39
      %p43 = pneg %p37
      %p44 = scmp.eq.s32.totalorder %s16, 1
      %p45 = por %p43, %p44
      %p46 = scmp.ne.s32.totalorder %s38, %s41
      %p47 = scmp.eq.s32.totalorder %s16, 0
      %p48 = por %p46, %p47
      %p49 = scmp.ne.s32.totalorder %s38, %s41
      %p50 = scmp.eq.s32.totalorder %s21, 1
      %p51 = por %p49, %p50
      %p52 = scmp.ne.s32.totalorder %s41, %s42
      %p53 = scmp.eq.s32.totalorder %s21, 0
      %p54 = por %p52, %p53
      %p55 = scmp.ne.s32.totalorder %s41, %s42
      %p56 = scmp.eq.s32.totalorder %s22, 1
      %p57 = por %p55, %p56
      %p59 = scmp.ne.s32.totalorder %s42, %s58
      %p60 = scmp.eq.s32.totalorder %s22, 0
      %p61 = por %p59, %p60
      %s62 = ssub.s32 %s24, %s31
      %p63 = scmp.eq.s32.totalorder %s62, 0
      %s65 = sadd.s32 %s64, 1
      %s66 = scalar_select %p63, %s64, %s65
      %p69 = pneg %p63
      %p70 = scmp.eq.s32.totalorder %s16, 1
      %p71 = por %p69, %p70
      %p72 = scmp.ne.s32.totalorder %s64, %s67
      %p73 = scmp.eq.s32.totalorder %s16, 0
      %p74 = por %p72, %p73
      %p75 = scmp.ne.s32.totalorder %s64, %s67
      %p76 = scmp.eq.s32.totalorder %s21, 1
      %p77 = por %p75, %p76
      %p78 = scmp.ne.s32.totalorder %s67, %s68
      %p79 = scmp.eq.s32.totalorder %s21, 0
      %p80 = por %p78, %p79
      %p81 = scmp.ne.s32.totalorder %s67, %s68
      %p82 = scmp.eq.s32.totalorder %s22, 1
      %p83 = por %p81, %p82
      %p85 = scmp.ne.s32.totalorder %s68, %s84
      %p86 = scmp.eq.s32.totalorder %s22, 0
      %p87 = por %p85, %p86
      %s88 = ssub.s32 %s24, %s31
      %p89 = scmp.eq.s32.totalorder %s88, 0
      %s91 = sadd.s32 %s90, 1
      %s92 = scalar_select %p89, %s90, %s91
      %p95 = pneg %p89
      %p96 = scmp.eq.s32.totalorder %s16, 1
      %p97 = por %p95, %p96
      %p98 = scmp.ne.s32.totalorder %s90, %s93
      %p99 = scmp.eq.s32.totalorder %s16, 0
      %p100 = por %p98, %p99
      %p101 = scmp.ne.s32.totalorder %s90, %s93
      %p102 = scmp.eq.s32.totalorder %s21, 1
      %p103 = por %p101, %p102
      %p104 = scmp.ne.s32.totalorder %s93, %s94
      %p105 = scmp.eq.s32.totalorder %s21, 0
      %p106 = por %p104, %p105
      %p107 = scmp.ne.s32.totalorder %s93, %s94
      %p108 = scmp.eq.s32.totalorder %s22, 1
      %p109 = por %p107, %p108
      %p111 = scmp.ne.s32.totalorder %s94, %s110
      %p112 = scmp.eq.s32.totalorder %s22, 0
      %p113 = por %p111, %p112
      %s114 = ssub.s32 %s23, %s35
      %s115 = ssub.s32 %s24, %s31
      %s116 = sor.u32 %s114, %s115
      %p117 = scmp.eq.s32.totalorder %s116, 0
      %s119 = sadd.s32 %s118, 1
      %s120 = scalar_select %p117, %s118, %s119
      %p123 = pneg %p117
      %p124 = scmp.eq.s32.totalorder %s16, 1
      %p125 = por %p123, %p124
      %p126 = scmp.ne.s32.totalorder %s118, %s121
      %p127 = scmp.eq.s32.totalorder %s16, 0
      %p128 = por %p126, %p127
      %p129 = scmp.ne.s32.totalorder %s118, %s121
      %p130 = scmp.eq.s32.totalorder %s21, 1
      %p131 = por %p129, %p130
      %p132 = scmp.ne.s32.totalorder %s121, %s122
      %p133 = scmp.eq.s32.totalorder %s21, 0
      %p134 = por %p132, %p133
      %p135 = scmp.ne.s32.totalorder %s121, %s122
      %p136 = scmp.eq.s32.totalorder %s22, 1
      %p137 = por %p135, %p136
      %p139 = scmp.ne.s32.totalorder %s122, %s138
      %p140 = scmp.eq.s32.totalorder %s22, 0
      %p141 = por %p139, %p140
      %p142 = scmp.le.s32.totalorder 1, %s16
      %p143 = scmp.lt.s32.totalorder %s16, 3
      %p144 = pnand %p142, %p143
      %p145 = pneg %p144
      // Predicated region
      $region9: #{tpu_custom_call.1} parent=5 // pred_check
        _
      $region10: #{tpu_custom_call.1} parent=5 // pred_check_branch
        %147 = sbr.rel (%p144) target = $region12
      $region11: #{tpu_custom_call.1} parent=5 // pred_region
        %s148 = ssub.s32 %s16, 1
        // Predicated region
        $region13: #{tpu_custom_call.1} parent=11 // pred_check
          %p149 = pneg %p80
        $region14: #{tpu_custom_call.1} parent=11 // pred_check_branch
          %151 = sbr.rel (%p149) target = $region16
        $region15: #{tpu_custom_call.1} parent=11 // pred_region
          %s153 = ssub.s32 1024, 1024
          %154 = vsyncadd [#allocation7], %s153
          %s155 = smul.addr %s26, 64
          %s156 = scalar_lea.hbm %s1, %s155
          %s157 = sshll.u32 [#allocation6], 4
          %s158 = int_to_ptr.vmem [resolvable:$true] %s157
          %163 = dma.hbm_to_vmem [thread:$0]  %s156, 1024, %s158, [#allocation7], 64, 64, 4
        $region16: #{tpu_custom_call.1} parent=11 // pred_fallthru
          _
        // Predicated region
        $region17: #{tpu_custom_call.1} parent=11 // pred_check
          %p164 = pneg %p106
        $region18: #{tpu_custom_call.1} parent=11 // pred_check_branch
          %166 = sbr.rel (%p164) target = $region20
        $region19: #{tpu_custom_call.1} parent=11 // pred_region
          %p167 = scmp.lt.s32.totalorder %s26, 0
          %s168 = scalar_select %p167, %s26, 0
          %s169 = scalar_lea.vmem %s2, %s168
        $region20: #{tpu_custom_call.1} parent=11 // pred_fallthru
          _
      $region12: #{tpu_custom_call.1} parent=5 // pred_fallthru
        _
      %p170 = scmp.lt.s32.totalorder %s16, 2
      // Predicated region
      $region21: #{tpu_custom_call.1} parent=5 // pred_check
        %p171 = pneg %p170
      $region22: #{tpu_custom_call.1} parent=5 // pred_check_branch
        %173 = sbr.rel (%p171) target = $region24
      $region23: #{tpu_custom_call.1} parent=5 // pred_region
        // Predicated region
        $region25: #{tpu_custom_call.1} parent=23 // pred_check
          %p174 = pneg %p48
        $region26: #{tpu_custom_call.1} parent=23 // pred_check_branch
          %176 = sbr.rel (%p174) target = $region28
        $region27: #{tpu_custom_call.1} parent=23 // pred_region
          %s177 = sand.u32 %s38, 1
          %s178 = scalar_lea.sflag [#allocation4], %s177
          %s179 = sand.u32 %s38, 1
          %s180 = smul.addr %s179, 8
          %s181 = scalar_lea.vmem [#allocation3], %s180
          %s183 = ssub.s32 128, 128
          %184 = vsyncadd %s178, %s183
          %s185 = smul.addr %s23, 128
          %s186 = scalar_lea.hbm %s0, %s185
          %s188 = sshll.u32 %s181, 4
          %s189 = int_to_ptr.vmem [resolvable:$true] %s188
          %191 = dma.hbm_to_vmem [thread:$0]  %s186, 128, %s189, %s178
        $region28: #{tpu_custom_call.1} parent=23 // pred_fallthru
          _
      $region24: #{tpu_custom_call.1} parent=5 // pred_fallthru
        _
      %p192 = scmp.le.s32.totalorder 1, %s16
      %p193 = scmp.lt.s32.totalorder %s16, 3
      %p194 = pnand %p192, %p193
      %p195 = pneg %p194
      // Predicated region
      $region29: #{tpu_custom_call.1} parent=5 // pred_check
        _
      $region30: #{tpu_custom_call.1} parent=5 // pred_check_branch
        %197 = sbr.rel (%p194) target = $region32
      $region31: #{tpu_custom_call.1} parent=5 // pred_region
        %s198 = ssub.s32 %s16, 1
        %s199 = sand.u32 %s41, 1
        %s200 = scalar_lea.sflag [#allocation4], %s199
        %s201 = sand.u32 %s41, 1
        %s202 = smul.addr %s201, 8
        %s203 = scalar_lea.vmem [#allocation3], %s202
        // Predicated region
        $region33: #{tpu_custom_call.1} parent=31 // pred_check
          %p204 = pneg %p54
        $region34: #{tpu_custom_call.1} parent=31 // pred_check_branch
          %206 = sbr.rel (%p204) target = $region36
        $region35: #{tpu_custom_call.1} parent=31 // pred_region
          %207 = dma.done %s200, 128
        $region36: #{tpu_custom_call.1} parent=31 // pred_fallthru
          _
        // Predicated region
        $region37: #{tpu_custom_call.1} parent=31 // pred_check
          %p208 = pneg %p80
        $region38: #{tpu_custom_call.1} parent=31 // pred_check_branch
          %210 = sbr.rel (%p208) target = $region40
        $region39: #{tpu_custom_call.1} parent=31 // pred_region
          %211 = dma.done [#allocation7], 1024
        $region40: #{tpu_custom_call.1} parent=31 // pred_fallthru
          _
        %s212 = sand.u32 %s41, 1
        %s213 = scalar_lea.sflag [#allocation4], %s212
        %s214 = sand.u32 %s41, 1
        %s215 = smul.addr %s214, 8
        %s216 = scalar_lea.vmem [#allocation3], %s215
        %p217 = pneg %p54
        %p218 = pneg %p51
        %p219 = pneg %p80
        %p220 = pneg %p77
        %p221 = scmp.lt.s32.totalorder %s26, 0
        %s222 = scalar_select %p221, %s26, 0
        %s223 = scalar_lea.vmem %s2, %s222
        %p224 = pneg %p106
        %p225 = pneg %p103
        %p226 = pneg %p134
        %p227 = pneg %p131
        %s228 = sand.u32 %s121, 1
        %s229 = scalar_lea.sflag [#allocation5], %s228
        %s230 = sand.u32 %s121, 1
        %s231 = smul.addr %s230, 8
        %s232 = scalar_lea.vmem [#allocation8], %s231
        %p233 = scmp.lt.s32.totalorder %s26, 0
        %s234 = scalar_select %p233, %s26, 0
        %s235 = scalar_lea.vmem %s2, %s234
        %p237 = scmp.eq.s32.totalorder %s26, 0
        // Predicated region
        $region41: #{tpu_custom_call.1} parent=31 // pred_check
          %p238 = pneg %p237
        $region42: #{tpu_custom_call.1} parent=31 // pred_check_branch
          %240 = sbr.rel (%p238) target = $region44
        $region43: #{tpu_custom_call.1} parent=31 // pred_region
          %v241 = vld [vmem:[%s203] sm:$0xff]
          %v242 = vpack.c.bf16 %v241, %v241
          %243 = vst [vmem:[#allocation2] sm:$0xf] %v242
        $region44: #{tpu_custom_call.1} parent=31 // pred_fallthru
          _
        %v244 = vld [vmem:[#allocation2] sm:$0xf]
        %v245 = vld [vmem:[#allocation6] sm:$0xf]
        %v246 = vld [vmem:[#allocation6 + $0x4] sm:$0xf]
        %v247 = vld [vmem:[#allocation6 + $0x8] sm:$0xf]
        %v248 = vld [vmem:[#allocation6 + $0xc] sm:$0xf]
        %v249 = vld [vmem:[#allocation6 + $0x10] sm:$0xf]
        %v250 = vld [vmem:[#allocation6 + $0x14] sm:$0xf]
        %v251 = vld [vmem:[#allocation6 + $0x18] sm:$0xf]
        %v252 = vld [vmem:[#allocation6 + $0x1c] sm:$0xf]
        %v253 = vld [vmem:[#allocation6 + $0x20] sm:$0xf]
        %v254 = vld [vmem:[#allocation6 + $0x24] sm:$0xf]
        %v255 = vld [vmem:[#allocation6 + $0x28] sm:$0xf]
        %v256 = vld [vmem:[#allocation6 + $0x2c] sm:$0xf]
        %v257 = vld [vmem:[#allocation6 + $0x30] sm:$0xf]
        %v258 = vld [vmem:[#allocation6 + $0x34] sm:$0xf]
        %v259 = vld [vmem:[#allocation6 + $0x38] sm:$0xf]
        %v260 = vld [vmem:[#allocation6 + $0x3c] sm:$0xf]
        %s261 = smul.u32 %s26, 128
        %s262 = sshra.s32 %s261, 7
        %s263 = sand.u32 %s261, 127
        %s264 = scalar_lea.vmem %s203, %s262 [#allocation3]
        %v265 = vld [vmem:[%s264] sm:$0xff]
        %v266 = vld [vmem:[%s235] sm:$0x1]
        %v268 = vlaneseq
        %v269 = vshrl.u32 %v268, 7
        %v270 = vsub.s32 0, %v269
        %v271 = vrot.slane %v266, %v270
        %v289 = vunpack.c.l.b16 %v245
        %v290 = vunpack.c.l.b16 %v246
        %v291 = vunpack.c.l.b16 %v247
        %v292 = vunpack.c.l.b16 %v248
        %v293 = vunpack.c.l.b16 %v249
        %v294 = vunpack.c.l.b16 %v250
        %v295 = vunpack.c.l.b16 %v251
        %v296 = vunpack.c.l.b16 %v252
        %v297 = vunpack.c.l.b16 %v253
        %v298 = vunpack.c.l.b16 %v254
        %v299 = vunpack.c.l.b16 %v255
        %v300 = vunpack.c.l.b16 %v256
        %v301 = vunpack.c.l.b16 %v257
        %v302 = vunpack.c.l.b16 %v258
        %v303 = vunpack.c.l.b16 %v259
        %v304 = vunpack.c.l.b16 %v260
        %v305 = vpack.c.b16 %v290, %v289
        %v306 = vpack.c.b16 %v292, %v291
        %v307 = vpack.c.b16 %v294, %v293
        %v308 = vpack.c.b16 %v296, %v295
        %v309 = vpack.c.b16 %v298, %v297
        %v310 = vpack.c.b16 %v300, %v299
        %v311 = vpack.c.b16 %v302, %v301
        %v312 = vpack.c.b16 %v304, %v303
        %321 = vmatprep.subr.bf16.mxu0 0
        %322 = vmatpush1.bf16.msra.mxu0 %v305
        %323 = vmatprep.subr.bf16.mxu0 0
        %324 = vmatpush1.bf16.msra.mxu0 %v306
        %325 = vmatprep.subr.bf16.mxu0 0
        %326 = vmatpush1.bf16.msra.mxu0 %v307
        %327 = vmatprep.subr.bf16.mxu0 0
        %328 = vmatpush1.bf16.msra.mxu0 %v308
        %329 = vmatprep.subr.bf16.mxu0 0
        %330 = vmatpush1.bf16.msra.mxu0 %v309
        %331 = vmatprep.subr.bf16.mxu0 0
        %332 = vmatpush1.bf16.msra.mxu0 %v310
        %333 = vmatprep.subr.bf16.mxu0 0
        %334 = vmatpush1.bf16.msra.mxu0 %v311
        %335 = vmatprep.subr.bf16.mxu0 0
        %336 = vmatpush1.bf16.msra.mxu0 %v312
        %337 = vmatprep.subr.bf16.mxu0 0
        %338 = vmatpush1.bf16.msra.mxu0 0
        %339 = vmatprep.subr.bf16.mxu0 0
        %340 = vmatpush1.bf16.msra.mxu0 0
        %341 = vmatprep.subr.bf16.mxu0 0
        %342 = vmatpush1.bf16.msra.mxu0 0
        %343 = vmatprep.subr.bf16.mxu0 0
        %344 = vmatpush1.bf16.msra.mxu0 0
        %345 = vmatprep.subr.bf16.mxu0 0
        %346 = vmatpush1.bf16.msra.mxu0 0
        %347 = vmatprep.subr.bf16.mxu0 0
        %348 = vmatpush1.bf16.msra.mxu0 0
        %349 = vmatprep.subr.bf16.mxu0 0
        %350 = vmatpush1.bf16.msra.mxu0 0
        %351 = vmatprep.subr.bf16.mxu0 0
        %352 = vmatpush1.bf16.msra.mxu0 0
        %353 = vmatprep.mubr.bf16.mxu0 0
        %354 = vmatmul.mubr.bf16.gmra.mrb[0].mxu0 %v244
        %v355 = vpop.f32.mrb[0].mxu0
        %v356 = vadd.f32 %v271, %v355
        %v357 = vpop.f32.mrb[0].mxu0
        %v358 = vpop.f32.mrb[0].mxu0
        %v359 = vpop.f32.mrb[0].mxu0
        %360 = vdwg.mxu0
        %v361 = vadd.f32 %v356, %v265
        %362 = vst [vmem:[%s232] sm:$0xff] %v361
        %s363 = sand.u32 %s121, 1
        %s364 = scalar_lea.sflag [#allocation5], %s363
        %s365 = sand.u32 %s121, 1
        %s366 = smul.addr %s365, 8
        %s367 = scalar_lea.vmem [#allocation8], %s366
        // Predicated region
        $region45: #{tpu_custom_call.1} parent=31 // pred_check
          %p368 = pneg %p131
        $region46: #{tpu_custom_call.1} parent=31 // pred_check_branch
          %370 = sbr.rel (%p368) target = $region48
        $region47: #{tpu_custom_call.1} parent=31 // pred_region
          %s372 = ssub.s32 128, 128
          %373 = vsyncadd %s364, %s372
          %s374 = sadd.s32 %s26, %s25
          %s375 = smul.addr %s374, 128
          %s376 = scalar_lea.hbm %s3, %s375
          %s378 = sshll.u32 %s367, 4
          %s379 = int_to_ptr.vmem [resolvable:$true] %s378
          %381 = dma.vmem_to_hbm [thread:$0]  %s379, 128, %s376, %s364
        $region48: #{tpu_custom_call.1} parent=31 // pred_fallthru
          _
      $region32: #{tpu_custom_call.1} parent=5 // pred_fallthru
        _
      %p382 = scmp.le.s32.totalorder 2, %s16
      // Predicated region
      $region49: #{tpu_custom_call.1} parent=5 // pred_check
        %p383 = pneg %p382
      $region50: #{tpu_custom_call.1} parent=5 // pred_check_branch
        %385 = sbr.rel (%p383) target = $region52
      $region51: #{tpu_custom_call.1} parent=5 // pred_region
        %s386 = ssub.s32 %s16, 2
        // Predicated region
        $region53: #{tpu_custom_call.1} parent=51 // pred_check
          %p387 = pneg %p137
        $region54: #{tpu_custom_call.1} parent=51 // pred_check_branch
          %389 = sbr.rel (%p387) target = $region56
        $region55: #{tpu_custom_call.1} parent=51 // pred_region
          %s390 = sand.u32 %s122, 1
          %s391 = scalar_lea.sflag [#allocation5], %s390
          %s392 = sand.u32 %s122, 1
          %s393 = smul.addr %s392, 8
          %s394 = scalar_lea.vmem [#allocation8], %s393
          %395 = dma.done %s391, 128
        $region56: #{tpu_custom_call.1} parent=51 // pred_fallthru
          _
      $region52: #{tpu_custom_call.1} parent=5 // pred_fallthru
        _
    $region6: #{tpu_custom_call.1} parent=1 // loop_footer
      %s20 = sadd.s32 1, %s16
    $region7: #{tpu_custom_call.1} parent=1 // loop_footer_branch
      %15 = sbr.rel target = $region3
    $region8: #{tpu_custom_call.1} parent=1 // loop_exit
      _
    %396 = vsyncpa [#allocation4], 1
    %s397 = scalar_lea.sflag [#allocation4], 1
    %398 = vsyncpa %s397, 1
    %399 = vsyncpa [#allocation7], 1
    %400 = vsyncpa [#allocation5], 1
    %s401 = scalar_lea.sflag [#allocation5], 1
    %402 = vsyncpa %s401, 1

</llo_original>
